<compile_context>
chip_gen: v7x
topology: tpu7x:2x2x1
jax: 0.10.0
libtpu: 0.0.40
codegen_flags: <defaults>
</compile_context>

<pallas_src>
import functools

import numpy as np
import jax
import jax.numpy as jnp
from jax.experimental import pallas as pl
from jax.experimental.pallas import tpu as pltpu

LOG2PI = float(np.log(2.0 * np.pi))
_SQRT2 = float(np.sqrt(2.0))

_VMEM_BLOCK_BUDGET = 4 << 20        # bytes for one set of blocks (x2 double-buffer ~ 8 MiB)
_MAX_ROW_TILE = 2048                # upper bound on rows per grid step
_VMEM_LIMIT_BYTES = 32 * 1024 * 1024


# ----------------------------------------------------------------------------
# host-side helpers
# ----------------------------------------------------------------------------
def _round_up(x, m):
    return (x + m - 1) // m * m


def _lane_pad(w):
    # VMEM lane padding of a trailing width (min one 128-lane tile)
    return max(128, _round_up(int(w), 128))


def _row_tile(n, widths, tile_rows=None, itemsize=4):
    """Pick a row-tile (multiple of 8) so the double-buffered VMEM working set
    of all listed blocks stays around 2 * _VMEM_BLOCK_BUDGET."""
    if tile_rows is not None:
        tm = max(8, (int(tile_rows) // 8) * 8)
    else:
        row_bytes = sum(_lane_pad(w) for w in widths) * itemsize
        tm = _VMEM_BLOCK_BUDGET // max(row_bytes, 1)
        tm = max(8, min(int(tm), _MAX_ROW_TILE))
        tm = (tm // 8) * 8
    return min(tm, _round_up(int(n), 8))


def _row_spec(tm, width):
    return pl.BlockSpec((tm, width), lambda i: (i, 0))


def _cparams():
    return pltpu.CompilerParams(dimension_semantics=("parallel",),
                                vmem_limit_bytes=_VMEM_LIMIT_BYTES)


def _erf(x):
    # Abramowitz & Stegun 7.1.26, |err| < 1.5e-7. Only mul/add/div/exp so it
    # lowers cleanly on the VPU/EUP.
    a1, a2, a3, a4, a5 = (0.254829592, -0.284496736, 1.421413741,
                          -1.453152027, 1.061405429)
    p = 0.3275911
    ax = jnp.abs(x)
    t = 1.0 / (1.0 + p * ax)
    poly = ((((a5 * t + a4) * t + a3) * t + a2) * t + a1) * t
    y = 1.0 - poly * jnp.exp(-(ax * ax))
    return jnp.where(x < 0.0, -y, y)


# ----------------------------------------------------------------------------
# kernels
# ----------------------------------------------------------------------------
def _continuous_update_kernel(sigma1, t_ref, x_ref, eps_ref, mu_ref, gamma_ref):
    # gamma = 1 - sigma1 ** (2 t);  mu = gamma x + eps sqrt(gamma (1-gamma))
    log_s1 = float(np.log(sigma1))
    t = t_ref[...].astype(jnp.float32)                      # [TM, 1]
    x = x_ref[...].astype(jnp.float32)                      # [TM, D]
    eps = eps_ref[...].astype(jnp.float32)
    gamma = 1.0 - jnp.exp(2.0 * t * log_s1)                 # sigma1 ** (2 t)
    mu = gamma * x + eps * jnp.sqrt(gamma * (1.0 - gamma))
    mu_ref[...] = mu.astype(mu_ref.dtype)
    gamma_ref[...] = gamma.astype(gamma_ref.dtype)


def _discrete_update_kernel(beta1, K, t_ref, x_ref, eps_ref, theta_ref):
    # beta = beta1 t^2; y ~ N(beta (K x - 1), beta K); theta = softmax(y, -1)
    t = t_ref[...].astype(jnp.float32)                      # [TM, 1]
    x = x_ref[...].astype(jnp.float32)                      # [TM, K]
    eps = eps_ref[...].astype(jnp.float32)
    beta = beta1 * t * t
    y = beta * (K * x - 1.0) + jnp.sqrt(beta * K) * eps
    y_max = jnp.max(y, axis=-1, keepdims=True)
    e = jnp.exp(y - y_max)
    theta_ref[...] = (e / jnp.sum(e, axis=-1, keepdims=True)).astype(theta_ref.dtype)


def _ctime_cont_loss_kernel(sigma1, t_ref, xp_ref, x_ref, loss_ref):
    # -log(sigma1) * sigma1^(-2 t) * sum_D (x_pred - x)^2
    log_s1 = float(np.log(sigma1))
    t = t_ref[...].astype(jnp.float32)                      # [TM, 1]
    d = xp_ref[...].astype(jnp.float32) - x_ref[...].astype(jnp.float32)
    sq = jnp.sum(d * d, axis=-1, keepdims=True)             # [TM, 1]
    w = jnp.exp(-2.0 * t * log_s1)                          # sigma1 ** (-2 t)
    loss_ref[...] = ((-log_s1) * w * sq).astype(loss_ref.dtype)


def _ctime_disc_loss_kernel(beta1, K, t_ref, ex_ref, eh_ref, loss_ref):
    # K * beta1 * t * sum_K (e_x - e_hat)^2
    t = t_ref[...].astype(jnp.float32)
    d = ex_ref[...].astype(jnp.float32) - eh_ref[...].astype(jnp.float32)
    sq = jnp.sum(d * d, axis=-1, keepdims=True)
    loss_ref[...] = (K * beta1 * t * sq).astype(loss_ref.dtype)


def _dtime_gjj_kernel(n_steps, beta1, K, n_valid, tm,
                      i_ref, ex_ref, eh_ref, eps_ref, out_ref):
    # Gaussian-mixture log-likelihood loss (dtime4discrete_loss_gjj) as a
    # parallel tiled reduction: each grid step writes one f32 partial sum
    # into its own (8,128) output block (summed in JAX afterwards).
    i = i_ref[...].astype(jnp.float32)                      # [TM, 1]
    ex = ex_ref[...].astype(jnp.float32)                    # [TM, K]
    eh = eh_ref[...].astype(jnp.float32)
    eps = eps_ref[...].astype(jnp.float32)

    alpha = beta1 * (2.0 * i - 1.0) / (n_steps * n_steps)   # [TM, 1]
    std = jnp.sqrt(alpha * K)                               # [TM, 1]
    y = alpha * (K * ex - 1.0) + std * eps                  # [TM, K]
    # mean_matrix = K*I - 1  =>  sum_d (y_d - m_{k,d})^2
    #   = ||y||^2 - 2*(K*y_k - sum_d y_d) + K*(K-1)         (kept 2-D)
    y_sq = jnp.sum(y * y, axis=-1, keepdims=True)           # [TM, 1]
    y_sum = jnp.sum(y, axis=-1, keepdims=True)              # [TM, 1]
    sq = y_sq - 2.0 * (K * y - y_sum) + K * (K - 1.0)       # [TM, K]
    log_gauss = K * (-0.5 * LOG2PI - jnp.log(std)) - sq / (2.0 * std * std)
    inner = jnp.log(eh) + log_gauss                         # [TM, K]
    mmax = jnp.max(inner, axis=-1, keepdims=True)
    lse = mmax + jnp.log(jnp.sum(jnp.exp(inner - mmax), axis=-1, keepdims=True))

    # mask boundary-tile / invalid rows (garbage reads past N are dropped here)
    row = pl.program_id(0) * tm + jax.lax.broadcasted_iota(jnp.int32, lse.shape, 0)
    lse = jnp.where(row < n_valid, lse, 0.0)
    partial = n_steps * (-jnp.sum(lse))                     # scalar f32

    r = jax.lax.broadcasted_iota(jnp.int32, (8, 128), 0)
    c = jax.lax.broadcasted_iota(jnp.int32, (8, 128), 1)
    out_ref[...] = jnp.where((r == 0) & (c == 0), partial, 0.0).astype(out_ref.dtype)


def _discretised_cdf_kernel(B, D, mu_ref, sigma_ref, c_ref, f_ref):
    # 0.5 * (1 + erf((x - mu) / (sigma sqrt 2))), clamped to {0,1} at |x|>=1.
    # Output block is lane-dense (TM, B*D); bin b occupies lanes [b*D, (b+1)*D).
    mu = mu_ref[...].astype(jnp.float32)                    # [TM, D]
    sg = sigma_ref[...].astype(jnp.float32)                 # [TM, D]
    for b in range(B):                                      # B is small & static
        c_b = c_ref[:, b * D:(b + 1) * D].astype(jnp.float32)   # [1, D]
        f_b = 0.5 * (1.0 + _erf((c_b - mu) / (sg * _SQRT2)))
        f_b = jnp.where(c_b >= 1.0, 1.0, f_b)
        f_b = jnp.where(c_b <= -1.0, 0.0, f_b)
        f_ref[:, b * D:(b + 1) * D] = f_b.astype(f_ref.dtype)


# ----------------------------------------------------------------------------
# BFNBase wrapper (Pallas-backed)
# ----------------------------------------------------------------------------
class BFNBasePallas:
    @staticmethod
    def get_k_params(bins):
        list_c, list_l, list_r = [], [], []
        for k in range(1, int(bins) + 1):
            k_c = (2 * k - 1) / bins - 1
            list_c.append(k_c)
            list_l.append(k_c - 1 / bins)
            list_r.append(k_c + 1 / bins)
        return (list_c, list_l, list_l)   # mirrors the reference (returns l twice)

    @staticmethod
    def continuous_var_bayesian_update(t, sigma1, x, eps, tile_rows=None):
        # eps passed explicitly (functional stand-in for torch.randn_like)
        N, D = x.shape
        tm = _row_tile(N, (1, D, D, D, 1), tile_rows)
        mu, gamma = pl.pallas_call(
            functools.partial(_continuous_update_kernel, float(sigma1)),
            grid=(pl.cdiv(N, tm),),
            in_specs=[_row_spec(tm, 1), _row_spec(tm, D), _row_spec(tm, D)],
            out_specs=(_row_spec(tm, D), _row_spec(tm, 1)),
            out_shape=(jax.ShapeDtypeStruct((N, D), x.dtype),
                       jax.ShapeDtypeStruct((N, 1), x.dtype)),
            compiler_params=_cparams(),
        )(t, x, eps)
        return mu, gamma

    # identical math in the reference module
    discreteised_var_bayesian_update = continuous_var_bayesian_update

    @staticmethod
    def discrete_var_bayesian_update(t, beta1, x, K, eps, tile_rows=None):
        N, Kd = x.shape
        tm = _row_tile(N, (1, Kd, Kd, Kd), tile_rows)
        theta = pl.pallas_call(
            functools.partial(_discrete_update_kernel, float(beta1), float(K)),
            grid=(pl.cdiv(N, tm),),
            in_specs=[_row_spec(tm, 1), _row_spec(tm, Kd), _row_spec(tm, Kd)],
            out_specs=_row_spec(tm, Kd),
            out_shape=jax.ShapeDtypeStruct((N, Kd), x.dtype),
            compiler_params=_cparams(),
        )(t, x, eps)
        return theta

    @staticmethod
    def ctime4continuous_loss(t, sigma1, x_pred, x, tile_rows=None):
        # TODO(synk): segment_ids (scatter_mean) branch not implemented.
        N, D = x.shape
        tm = _row_tile(N, (1, D, D, 1), tile_rows)
        loss = pl.pallas_call(
            functools.partial(_ctime_cont_loss_kernel, float(sigma1)),
            grid=(pl.cdiv(N, tm),),
            in_specs=[_row_spec(tm, 1), _row_spec(tm, D), _row_spec(tm, D)],
            out_specs=_row_spec(tm, 1),
            out_shape=jax.ShapeDtypeStruct((N, 1), x.dtype),
            compiler_params=_cparams(),
        )(t, x_pred, x)
        return loss.reshape(N)

    @staticmethod
    def ctime4discrete_loss(t, beta1, one_hot_x, p_0, K, tile_rows=None):
        N, Kd = one_hot_x.shape
        tm = _row_tile(N, (1, Kd, Kd, 1), tile_rows)
        loss = pl.pallas_call(
            functools.partial(_ctime_disc_loss_kernel, float(beta1), float(K)),
            grid=(pl.cdiv(N, tm),),
            in_specs=[_row_spec(tm, 1), _row_spec(tm, Kd), _row_spec(tm, Kd)],
            out_specs=_row_spec(tm, 1),
            out_shape=jax.ShapeDtypeStruct((N, 1), one_hot_x.dtype),
            compiler_params=_cparams(),
        )(t, one_hot_x, p_0)
        return loss.reshape(N)

    @staticmethod
    def dtime4discrete_loss_gjj(i, n_steps, beta1, one_hot_x, p_0, K, eps,
                                tile_rows=None):
        N, Kd = one_hot_x.shape
        tm = _row_tile(N, (1, Kd, Kd, Kd), tile_rows)
        g = pl.cdiv(N, tm)
        partial = pl.pallas_call(
            functools.partial(_dtime_gjj_kernel, float(n_steps), float(beta1),
                              float(K), int(N), int(tm)),
            grid=(g,),
            in_specs=[_row_spec(tm, 1), _row_spec(tm, Kd),
                      _row_spec(tm, Kd), _row_spec(tm, Kd)],
            out_specs=pl.BlockSpec((8, 128), lambda gg: (gg, 0)),
            out_shape=jax.ShapeDtypeStruct((8 * g, 128), jnp.float32),
            compiler_params=_cparams(),
        )(i, one_hot_x, p_0, eps)
        # tiny host-side reduction over per-tile partial sums (f32 accumulation)
        return jnp.sum(partial)

    @staticmethod
    def discretised_cdf(mu, sigma, x_centers, tile_rows=None):
        N, D = mu.shape
        xc = jnp.asarray(x_centers, jnp.float32)
        B = xc.shape[1]
        # flatten the (1, B, 1-or-D) centers to a lane-dense (1, B*D) row
        c_flat = jnp.broadcast_to(xc.reshape((1, B, -1)), (1, B, D)).reshape(1, B * D)
        tm = _row_tile(N, (D, D, B * D), tile_rows)
        f2d = pl.pallas_call(
            functools.partial(_discretised_cdf_kernel, int(B), int(D)),
            grid=(pl.cdiv(N, tm),),
            in_specs=[_row_spec(tm, D), _row_spec(tm, D),
                      pl.BlockSpec((1, B * D), lambda i: (0, 0))],
            out_specs=_row_spec(tm, B * D),
            out_shape=jax.ShapeDtypeStruct((N, B * D), mu.dtype),
            compiler_params=_cparams(),
        )(mu, sigma, c_flat)
        # reshape only for API parity with the reference; callers that can
        # consume the lane-dense (N, B*D) slab should use it directly.
        return f2d.reshape(N, B, D)

    # TODO(synk): dtime4discrete_loss_prob relies on torch.distributions
    # MixtureSameFamily Monte-Carlo sampling; no clean single-kernel Pallas
    # equivalent is provided here.


# ----------------------------------------------------------------------------
# Pure-JAX references (same math as the PyTorch module) for sanity checks
# ----------------------------------------------------------------------------
def _ref_cont_update(t, sigma1, x, eps):
    gamma = 1.0 - jnp.power(sigma1, 2.0 * t)
    return gamma * x + eps * jnp.sqrt(gamma * (1.0 - gamma)), gamma


def _ref_disc_update(t, beta1, x, K, eps):
    beta = beta1 * t ** 2
    y = beta * (K * x - 1.0) + jnp.sqrt(beta * K) * eps
    return jax.nn.softmax(y, axis=-1)


def _ref_ctime_cont(t, sigma1, xp, x):
    return -jnp.log(sigma1) * jnp.power(sigma1, -2.0 * t.reshape(-1)) * \
        jnp.sum((xp - x) ** 2, axis=1)


def _ref_ctime_disc(t, beta1, ex, eh, K):
    return K * beta1 * t.reshape(-1) * jnp.sum((ex - eh) ** 2, axis=-1)


def _ref_gjj(i, n_steps, beta1, ex, eh, K, eps):
    alpha = beta1 * (2 * i - 1) / n_steps ** 2
    y = alpha * (K * ex - 1) + jnp.sqrt(alpha * K) * eps
    mean_matrix = K * jnp.eye(K) - 1
    std_matrix = jnp.sqrt(alpha * K)[:, :, None]
    lg = (-0.5 * LOG2PI - jnp.log(std_matrix)
          - (y[:, None, :] - mean_matrix[None]) ** 2
          / (2 * std_matrix ** 2)).sum(-1)
    inner = jnp.log(eh) + lg
    ll = jax.scipy.special.logsumexp(inner, axis=-1)
    return n_steps * (-ll.sum())


def _ref_cdf(mu, sigma, xc):
    f = 0.5 * (1.0 + jax.lax.erf((xc - mu[:, None, :]) /
                                 (sigma[:, None, :] * _SQRT2)))
    f = jnp.where(xc >= 1.0, jnp.ones_like(f), f)
    f = jnp.where(xc <= -1.0, jnp.zeros_like(f), f)
    return f


# ----------------------------------------------------------------------------
def _make_inputs(key, N, D, K, n_steps):
    ks = jax.random.split(key, 12)
    t = jax.random.uniform(ks[0], (N, 1), jnp.float32, 0.05, 0.95)
    x = jax.random.normal(ks[1], (N, D), jnp.float32)
    x_pred = jax.random.normal(ks[2], (N, D), jnp.float32)
    eps_x = jax.random.normal(ks[3], (N, D), jnp.float32)
    cls = jax.random.randint(ks[4], (N,), 0, K)
    one_hot_x = jax.nn.one_hot(cls, K, dtype=jnp.float32)
    p_0 = jax.nn.softmax(jax.random.normal(ks[5], (N, K), jnp.float32), -1)
    eps_k = jax.random.normal(ks[6], (N, K), jnp.float32)
    i_steps = jax.random.randint(ks[7], (N, 1), 1, int(n_steps) + 1
                                 ).astype(jnp.float32)
    eps_gjj = jax.random.normal(ks[8], (N, K), jnp.float32)
    mu_in = jax.random.normal(ks[9], (N, D), jnp.float32)
    sigma_in = jax.random.uniform(ks[10], (N, D), jnp.float32, 0.1, 1.0)
    return (t, x, x_pred, eps_x, one_hot_x, p_0, eps_k, i_steps, eps_gjj,
            mu_in, sigma_in)


def _run_and_check(key, N, D, K, BINS, sigma1, beta1, n_steps, tile_rows):
    (t, x, x_pred, eps_x, one_hot_x, p_0, eps_k, i_steps, eps_gjj,
     mu_in, sigma_in) = _make_inputs(key, N, D, K, n_steps)

    k_c, _, _ = BFNBasePallas.get_k_params(BINS)
    x_centers = jnp.asarray(k_c, jnp.float32).reshape(1, BINS, 1)

    m = BFNBasePallas
    mu, gamma = m.continuous_var_bayesian_update(t, sigma1, x, eps_x,
                                                 tile_rows=tile_rows)
    theta = m.discrete_var_bayesian_update(t, beta1, one_hot_x, K, eps_k,
                                           tile_rows=tile_rows)
    l_cont = m.ctime4continuous_loss(t, sigma1, x_pred, x, tile_rows=tile_rows)
    l_disc = m.ctime4discrete_loss(t, beta1, one_hot_x, p_0, K,
                                   tile_rows=tile_rows)
    l_gjj = m.dtime4discrete_loss_gjj(i_steps, n_steps, beta1, one_hot_x,
                                      p_0, K, eps_gjj, tile_rows=tile_rows)
    cdf = m.discretised_cdf(mu_in, sigma_in, x_centers, tile_rows=tile_rows)

    for o in (mu, gamma, theta, l_cont, l_disc, l_gjj, cdf):
        jax.block_until_ready(o)

    # sanity-check against pure-JAX references of the PyTorch math
    r_mu, r_gamma = _ref_cont_update(t, sigma1, x, eps_x)
    assert np.allclose(mu, r_mu, atol=1e-4), "mu mismatch"
    assert np.allclose(gamma, r_gamma, atol=1e-5), "gamma mismatch"
    assert np.allclose(theta, _ref_disc_update(t, beta1, one_hot_x, K, eps_k),
                       atol=1e-4), "theta mismatch"
    assert np.allclose(l_cont, _ref_ctime_cont(t, sigma1, x_pred, x),
                       rtol=1e-4, atol=1e-2), "ctime cont loss mismatch"
    assert np.allclose(l_disc, _ref_ctime_disc(t, beta1, one_hot_x, p_0, K),
                       atol=1e-4), "ctime disc loss mismatch"
    assert np.allclose(l_gjj, _ref_gjj(i_steps, n_steps, beta1, one_hot_x,
                                       p_0, K, eps_gjj),
                       rtol=1e-4, atol=1e-2), "gjj loss mismatch"
    assert np.allclose(cdf, _ref_cdf(mu_in, sigma_in, x_centers),
                       atol=1e-4), "cdf mismatch"


if __name__ == "__main__":
    D, K, BINS = 32, 8, 4
    sigma1, beta1, n_steps = 0.02, 1.5, 10.0

    # case 1: small single-tile path (N multiple of 8, grid == 1)
    _run_and_check(jax.random.PRNGKey(0), 8, D, K, BINS,
                   sigma1, beta1, n_steps, tile_rows=None)

    # case 2: multi-tile path with a ragged boundary tile
    # (N=20, TM=8 -> grid=3, last tile partially out of bounds; writes are
    #  masked by Pallas and the gjj reduction masks rows in-kernel)
    _run_and_check(jax.random.PRNGKey(0), 20, D, K, BINS,
                   sigma1, beta1, n_steps, tile_rows=8)

    print("KERNEL_OK")
</pallas_src>

<mosaic_0001>
module attributes {stable_mosaic.version = 11 : i64} {
  func.func @_continuous_update_kernel(%arg0: i32, %arg1: memref<8x1xf32, #tpu.memory_space<vmem>>, %arg2: memref<8x32xf32, #tpu.memory_space<vmem>>, %arg3: memref<8x32xf32, #tpu.memory_space<vmem>>, %arg4: memref<8x32xf32, #tpu.memory_space<vmem>>, %arg5: memref<8x1xf32, #tpu.memory_space<vmem>>) attributes {dimension_semantics = [#tpu.dimension_semantics<parallel>], iteration_bounds = array<i64: 1>, scalar_prefetch = 0 : i64, scratch_operands = 0 : i64, tpu.core_type = #tpu.core_type<tc>, window_params = [{transform_indices = @transform_0, window_bounds = array<i64: 8, 1>}, {transform_indices = @transform_1, window_bounds = array<i64: 8, 32>}, {transform_indices = @transform_2, window_bounds = array<i64: 8, 32>}, {transform_indices = @transform_3, window_bounds = array<i64: 8, 32>}, {transform_indices = @transform_4, window_bounds = array<i64: 8, 1>}]} {
    %c0 = arith.constant 0 : index
    %c0_0 = arith.constant 0 : index
    %0 = vector.load %arg1[%c0, %c0_0] : memref<8x1xf32, #tpu.memory_space<vmem>>, vector<8x1xf32>
    %c0_1 = arith.constant 0 : index
    %c0_2 = arith.constant 0 : index
    %1 = vector.load %arg2[%c0_1, %c0_2] : memref<8x32xf32, #tpu.memory_space<vmem>>, vector<8x32xf32>
    %c0_3 = arith.constant 0 : index
    %c0_4 = arith.constant 0 : index
    %2 = vector.load %arg3[%c0_3, %c0_4] : memref<8x32xf32, #tpu.memory_space<vmem>>, vector<8x32xf32>
    %cst = arith.constant 2.000000e+00 : f32
    %3 = vector.broadcast %cst : f32 to vector<8x1xf32>
    %4 = arith.mulf %3, %0 : vector<8x1xf32>
    %cst_5 = arith.constant -3.91202307 : f32
    %5 = vector.broadcast %cst_5 : f32 to vector<8x1xf32>
    %6 = arith.mulf %4, %5 : vector<8x1xf32>
    %7 = math.exp %6 : vector<8x1xf32>
    %cst_6 = arith.constant 1.000000e+00 : f32
    %8 = vector.broadcast %cst_6 : f32 to vector<8x1xf32>
    %9 = arith.subf %8, %7 : vector<8x1xf32>
    %10 = vector.broadcast %9 : vector<8x1xf32> to vector<8x32xf32>
    %11 = arith.mulf %10, %1 : vector<8x32xf32>
    %cst_7 = arith.constant 1.000000e+00 : f32
    %12 = vector.broadcast %cst_7 : f32 to vector<8x1xf32>
    %13 = arith.subf %12, %9 : vector<8x1xf32>
    %14 = arith.mulf %9, %13 : vector<8x1xf32>
    %15 = math.sqrt %14 : vector<8x1xf32>
    %16 = vector.broadcast %15 : vector<8x1xf32> to vector<8x32xf32>
    %17 = arith.mulf %2, %16 : vector<8x32xf32>
    %18 = arith.addf %11, %17 : vector<8x32xf32>
    %c0_8 = arith.constant 0 : index
    %c0_9 = arith.constant 0 : index
    %19 = vector.load %arg4[%c0_8, %c0_9] : memref<8x32xf32, #tpu.memory_space<vmem>>, vector<8x32xf32>
    tpu.vector_store %arg4[%c0_8, %c0_9], %18 {strides = array<i32>} : memref<8x32xf32, #tpu.memory_space<vmem>>, vector<8x32xf32>,
    %c0_10 = arith.constant 0 : index
    %c0_11 = arith.constant 0 : index
    %20 = vector.load %arg5[%c0_10, %c0_11] : memref<8x1xf32, #tpu.memory_space<vmem>>, vector<8x1xf32>
    tpu.vector_store %arg5[%c0_10, %c0_11], %9 {strides = array<i32>} : memref<8x1xf32, #tpu.memory_space<vmem>>, vector<8x1xf32>,
    return
  }
  func.func @transform_0(%arg0: i32) -> (i32, i32) {
    %c0_i32 = arith.constant 0 : i32
    %c0_i32_0 = arith.constant 0 : i32
    return %arg0, %c0_i32 : i32, i32
  }
  func.func @transform_1(%arg0: i32) -> (i32, i32) {
    %c0_i32 = arith.constant 0 : i32
    %c0_i32_0 = arith.constant 0 : i32
    return %arg0, %c0_i32 : i32, i32
  }
  func.func @transform_2(%arg0: i32) -> (i32, i32) {
    %c0_i32 = arith.constant 0 : i32
    %c0_i32_0 = arith.constant 0 : i32
    return %arg0, %c0_i32 : i32, i32
  }
  func.func @transform_3(%arg0: i32) -> (i32, i32) {
    %c0_i32 = arith.constant 0 : i32
    %c0_i32_0 = arith.constant 0 : i32
    return %arg0, %c0_i32 : i32, i32
  }
  func.func @transform_4(%arg0: i32) -> (i32, i32) {
    %c0_i32 = arith.constant 0 : i32
    %c0_i32_0 = arith.constant 0 : i32
    return %arg0, %c0_i32 : i32, i32
  }
}

</mosaic_0001>

<llo_original>
// kernel: tpu_custom_call.1
$region0: #{tpu_custom_call.1}
  #allocation0 [shape = 'u32[]', space=smem, size = 0x4, offset = 0x4, fixed_abs, tag = 'smem constant byte address 0x4 - core index']
  #allocation1 [shape = 'u32[144,128]{1,0:T(1,128)}', space=vmem, size = 0x12000, scoped, tag = 'internal scratch']
  %s0 = inlined_call_operand.vmem [shape: f32[8,1], index: 0, kind: input, shape index: {}]
  %s1 = inlined_call_operand.vmem [shape: f32[8,32], index: 1, kind: input, shape index: {}]
  %s2 = inlined_call_operand.vmem [shape: f32[8,32], index: 2, kind: input, shape index: {}]
  %s3 = inlined_call_operand.hbm [shape: f32[8,32], index: 3, kind: output, shape index: {0}]
  %s4 = inlined_call_operand.vmem [shape: f32[8,1], index: 4, kind: output, shape index: {1}]
  %5 = xla_tuple %s3, %s4
  %s6 = sld [smem:[#allocation0]]
  $region30: #{tpu_custom_call.1} parent=0
    _
  %s8 = ssub.s32 1, %s6
  %s9 = scalar_select 0, %s8, %s6
  $region1: #{tpu_custom_call.1} parent=0
    #allocation2 [shape = 'u8[4096]{0}', space=vmem, size = 0x1000, scoped, tag = 'output window, operand 0, single buffered']
    #allocation3 [shape = 's32[1]{0}', space=sflag, size = 0x4, scoped, tag = 'scoped memory for tpu_custom_call.1']
    %10 = vsyncpa [#allocation3], 0
    // Predicated region
    $region2: #{tpu_custom_call.1} parent=1 // pred_check
      _
    $region3: #{tpu_custom_call.1} parent=1 // pred_check_branch
      %12 = sbr.rel (0) target = $region5
    $region4: #{tpu_custom_call.1} parent=1 // pred_region
      _
    $region5: #{tpu_custom_call.1} parent=1 // pred_fallthru
      _
    // Predicated region
    $region6: #{tpu_custom_call.1} parent=1 // pred_check
      _
    $region7: #{tpu_custom_call.1} parent=1 // pred_check_branch
      %14 = sbr.rel (0) target = $region9
    $region8: #{tpu_custom_call.1} parent=1 // pred_region
      _
    $region9: #{tpu_custom_call.1} parent=1 // pred_fallthru
      _
    // Predicated region
    $region10: #{tpu_custom_call.1} parent=1 // pred_check
      _
    $region11: #{tpu_custom_call.1} parent=1 // pred_check_branch
      %16 = sbr.rel (0) target = $region13
    $region12: #{tpu_custom_call.1} parent=1 // pred_region
      _
    $region13: #{tpu_custom_call.1} parent=1 // pred_fallthru
      _
    %v17 = vld [vmem:[%s0] sm:$0xff]
    %v18 = vld [vmem:[%s1] sm:$0xff]
    %v19 = vld [vmem:[%s2] sm:$0xff]
    %v20 = vmul.f32 %v17, 2.0
    %v21 = vmul.f32 %v20, -3.912023
    %v22 = vmul.f32 %v21, 1.442695
    %v23 = vpow.pop %v22
    %v24 = vsub.f32 1.0, %v23
    %26 = vset.pattern.permute.xlu0 0
    %27 = vperm.xlu0 %26, %v24
    %v28 = vpop.permute.xlu0 %27
    %v30 = vmul.f32 %v28, %v18
    %v31 = vsub.f32 1.0, %v24
    %v32 = vmul.f32 %v24, %v31
    %v33 = vrsqrt.pop %v32
    %v34 = vmul.f32 %v32, %v33
    %vm35 = vcmp.eq.f32.partialorder %v32, inf
    %v36 = vsel %vm35, %v32, %v34
    %vm37 = vcmp.eq.f32.partialorder %v32, 0.0
    %v38 = vand.u32 %v32, 2147483648
    %v39 = vsel %vm37, %v38, %v36
    %41 = vset.pattern.permute.xlu0 0
    %42 = vperm.xlu0 %41, %v39
    %v43 = vpop.permute.xlu0 %42
    %v45 = vmul.f32 %v19, %v43
    %v46 = vadd.f32 %v30, %v45
    %vm47 = vcmask 261120
    %48 = vst.msk [vmem:[#allocation2] sm:$0xff] %vm47, %v46
    %vm49 = vcmask 7168
    %50 = vst.msk [vmem:[%s4] sm:$0xff] %vm49, %v24
    // Predicated region
    $region14: #{tpu_custom_call.1} parent=1 // pred_check
      _
    $region15: #{tpu_custom_call.1} parent=1 // pred_check_branch
      %52 = sbr.rel (0) target = $region17
    $region16: #{tpu_custom_call.1} parent=1 // pred_region
      %s54 = ssub.s32 128, 128
      %55 = vsyncadd [#allocation3], %s54
      %s57 = sshll.u32 [#allocation2], 4
      %s58 = int_to_ptr.vmem [resolvable:$true] %s57
      %60 = dma.vmem_to_hbm [thread:$0]  %s58, 128, %s3, [#allocation3]
    $region17: #{tpu_custom_call.1} parent=1 // pred_fallthru
      _
    // Predicated region
    $region18: #{tpu_custom_call.1} parent=1 // pred_check
      _
    $region19: #{tpu_custom_call.1} parent=1 // pred_check_branch
      %62 = sbr.rel (0) target = $region21
    $region20: #{tpu_custom_call.1} parent=1 // pred_region
      _
    $region21: #{tpu_custom_call.1} parent=1 // pred_fallthru
      _
    // Predicated region
    $region22: #{tpu_custom_call.1} parent=1 // pred_check
      _
    $region23: #{tpu_custom_call.1} parent=1 // pred_check_branch
      %64 = sbr.rel (0) target = $region25
    $region24: #{tpu_custom_call.1} parent=1 // pred_region
      %65 = dma.done [#allocation3], 128
    $region25: #{tpu_custom_call.1} parent=1 // pred_fallthru
      _
    // Predicated region
    $region26: #{tpu_custom_call.1} parent=1 // pred_check
      _
    $region27: #{tpu_custom_call.1} parent=1 // pred_check_branch
      %67 = sbr.rel (0) target = $region29
    $region28: #{tpu_custom_call.1} parent=1 // pred_region
      _
    $region29: #{tpu_custom_call.1} parent=1 // pred_fallthru
      _
    %68 = vsyncpa [#allocation3], 1

</llo_original>
